<compile_context>
chip_gen: v5e
topology: v5e:2x2
jax: 0.10.0
libtpu: 0.0.40
codegen_flags: <defaults>
</compile_context>

<pallas_src>
import jax
import jax.numpy as jnp
from jax.experimental import pallas as pl
from jax.experimental.pallas import tpu as pltpu

IN_F = 796
H1 = 128
H2_REAL = 16
H2_PAD = 128
OUT_PAD = 128


def _round_up(n, m):
    return ((n + m - 1) // m) * m


def dqn_kernel(x_ref, w1_ref, b1_ref, w2_ref, b2_ref, w3_ref, b3_ref, out_ref):
    # layer1: (TM, 796) @ (796, 128) -- bf16 operands, f32 MXU accumulation.
    h1 = jnp.dot(x_ref[...], w1_ref[...], preferred_element_type=jnp.float32)
    h1 = jnp.maximum(h1 + b1_ref[...], 0.0)            # f32 elementwise (VPU)
    # layer2: (TM, 128) @ (128, 128); cols 16..127 of w2/b2 are zero-padded.
    h2 = jnp.dot(h1.astype(jnp.bfloat16), w2_ref[...],
                 preferred_element_type=jnp.float32)
    h2 = jnp.maximum(h2 + b2_ref[...], 0.0)
    # layer3: (TM, 128) @ (128, 128); only the first num_actions cols are real.
    o = jnp.dot(h2.astype(jnp.bfloat16), w3_ref[...],
                preferred_element_type=jnp.float32)
    out_ref[...] = o + b3_ref[...]
    # TODO(synk): optionally fuse the downstream consumer (argmax over Q-values
    # / the [:num_actions] slice, or a bf16 cast) to trim the padded f32
    # output writeback when Q-values do not feed a loss.


def _pick_tm(B, block_batch):
    """Batch tile: multiple of 16 (bf16 sublane packing).  Ensure >=2 grid
    steps when the batch is big enough so v7x's two TensorCores both engage."""
    if B <= 16:
        return B                      # single tile == full array dim (always legal)
    tm = min(block_batch, _round_up(B, 16))
    if pl.cdiv(B, tm) < 2:
        tm = max(16, _round_up(pl.cdiv(B, 2), 16))
    return tm


def dqn_forward(x, padded_params, num_actions, block_batch=512):
    """x: (B, 796); padded_params from prepare_params(). Returns (B, num_actions) f32.

    x is cast to bf16 (no-op if the caller already supplies bf16); under jit
    this cast fuses into x's producer, so the kernel reads a half-width
    activation stream and no padded HBM copy of x is ever materialized."""
    w1, b1, w2, b2, w3, b3 = padded_params
    B = x.shape[0]
    x = x.astype(jnp.bfloat16)
    TM = _pick_tm(B, block_batch)
    steps = pl.cdiv(B, TM)

    pinned = lambda i: (0, 0)   # weights/biases stay VMEM-resident across batch tiles
    x_spec_kwargs = {}
    if steps >= 3:
        # Deeper input buffering to hide the x DMA on v5e's slower HBM;
        # costs one extra bf16 x tile of VMEM.
        x_spec_kwargs = dict(pipeline_mode=pl.Buffered(3))

    out = pl.pallas_call(
        dqn_kernel,
        out_shape=jax.ShapeDtypeStruct((B, OUT_PAD), jnp.float32),
        grid=(steps,),
        in_specs=[
            pl.BlockSpec((TM, IN_F), lambda i: (i, 0), **x_spec_kwargs),
            pl.BlockSpec((IN_F, H1), pinned),
            pl.BlockSpec((1, H1), pinned),
            pl.BlockSpec((H1, H2_PAD), pinned),
            pl.BlockSpec((1, H2_PAD), pinned),
            pl.BlockSpec((H2_PAD, OUT_PAD), pinned),
            pl.BlockSpec((1, OUT_PAD), pinned),
        ],
        out_specs=pl.BlockSpec((TM, OUT_PAD), lambda i: (i, 0)),
        compiler_params=pltpu.CompilerParams(
            dimension_semantics=("parallel",)),
    )(x, w1, b1, w2, b2, w3, b3)
    return out[:, :num_actions]


def init_params(key, num_actions):
    """Deterministic f32 init mimicking torch.nn.Linear default (uniform +/- 1/sqrt(fan_in)).
    Weights are stored as (in_features, out_features) so the kernel computes x @ W + b."""
    dims = [(IN_F, H1), (H1, H2_REAL), (H2_REAL, num_actions)]
    params = []
    for (fan_in, fan_out) in dims:
        key, kw, kb = jax.random.split(key, 3)
        bound = 1.0 / (fan_in ** 0.5)
        w = jax.random.uniform(kw, (fan_in, fan_out), jnp.float32, -bound, bound)
        b = jax.random.uniform(kb, (1, fan_out), jnp.float32, -bound, bound)
        params.extend([w, b])
    return tuple(params)


def prepare_params(params_f32, num_actions):
    """Zero-pad layers 2/3 to lane-dense 128-wide shapes; weights -> bf16 (MXU
    operands), biases stay f32.  w1 keeps its 796 rows (no feature padding)."""
    w1, b1, w2, b2, w3, b3 = params_f32
    w1p = w1.astype(jnp.bfloat16)                                            # (796, 128)
    b1p = b1.astype(jnp.float32)                                             # (1, 128)
    w2p = jnp.zeros((H1, H2_PAD), jnp.float32).at[:, :H2_REAL].set(w2).astype(jnp.bfloat16)
    b2p = jnp.zeros((1, H2_PAD), jnp.float32).at[:, :H2_REAL].set(b2)
    w3p = (jnp.zeros((H2_PAD, OUT_PAD), jnp.float32)
           .at[:H2_REAL, :num_actions].set(w3).astype(jnp.bfloat16))
    b3p = jnp.zeros((1, OUT_PAD), jnp.float32).at[:, :num_actions].set(b3)
    return (w1p, b1p, w2p, b2p, w3p, b3p)


def _reference(x, params, bf16_operands):
    w1, b1, w2, b2, w3, b3 = params
    if bf16_operands:
        def dot(a, w):
            return jnp.dot(a.astype(jnp.bfloat16).astype(jnp.float32),
                           w.astype(jnp.bfloat16).astype(jnp.float32),
                           preferred_element_type=jnp.float32)
    else:
        dot = jnp.dot
    h = jnp.maximum(dot(x, w1) + b1, 0.0)
    h = jnp.maximum(dot(h, w2) + b2, 0.0)
    return dot(h, w3) + b3


if __name__ == "__main__":
    num_actions = 4
    batch = 2

    key = jax.random.PRNGKey(0)
    key, kx = jax.random.split(key)
    x = jax.random.normal(kx, (batch, IN_F), jnp.float32)
    params = init_params(key, num_actions)
    padded = prepare_params(params, num_actions)

    out = dqn_forward(x, padded, num_actions)
    jax.block_until_ready(out)
    assert out.shape == (batch, num_actions)

    # Reference 1: same math with bf16-rounded matmul operands, f32 accumulation
    # (mirrors the kernel's MXU path) -> tight-ish tolerance.
    ref_bf16 = _reference(x, params, bf16_operands=True)
    assert jnp.allclose(out, ref_bf16, atol=1e-2, rtol=1e-2), \
        float(jnp.max(jnp.abs(out - ref_bf16)))

    # Reference 2: original full-f32 DQN forward -> loose tolerance (bf16 weights/x).
    ref_f32 = _reference(x, params, bf16_operands=False)
    assert jnp.allclose(out, ref_f32, atol=5e-2, rtol=5e-2), \
        float(jnp.max(jnp.abs(out - ref_f32)))

    # Second check: ragged multi-tile batch (exercises >=2 "parallel" grid steps
    # and the masked partial last tile).
    key, kx2 = jax.random.split(key)
    x2 = jax.random.normal(kx2, (37, IN_F), jnp.float32)
    out2 = dqn_forward(x2, padded, num_actions)
    jax.block_until_ready(out2)
    ref2 = _reference(x2, params, bf16_operands=True)
    assert out2.shape == (37, num_actions)
    assert jnp.allclose(out2, ref2, atol=1e-2, rtol=1e-2), \
        float(jnp.max(jnp.abs(out2 - ref2)))

    print("KERNEL_OK")
</pallas_src>

<mosaic_0001>
module attributes {stable_mosaic.version = 11 : i64} {
  func.func @dqn_kernel(%arg0: i32, %arg1: memref<2x796xbf16, #tpu.memory_space<vmem>>, %arg2: memref<796x128xbf16, #tpu.memory_space<vmem>>, %arg3: memref<1x128xf32, #tpu.memory_space<vmem>>, %arg4: memref<128x128xbf16, #tpu.memory_space<vmem>>, %arg5: memref<1x128xf32, #tpu.memory_space<vmem>>, %arg6: memref<128x128xbf16, #tpu.memory_space<vmem>>, %arg7: memref<1x128xf32, #tpu.memory_space<vmem>>, %arg8: memref<2x128xf32, #tpu.memory_space<vmem>>) attributes {dimension_semantics = [#tpu.dimension_semantics<parallel>], iteration_bounds = array<i64: 1>, scalar_prefetch = 0 : i64, scratch_operands = 0 : i64, tpu.core_type = #tpu.core_type<tc>, window_params = [{transform_indices = @transform_0, window_bounds = array<i64: 2, 796>}, {pipeline_mode = #tpu.pipeline_mode<synchronous>, transform_indices = @transform_1, window_bounds = array<i64: 796, 128>}, {pipeline_mode = #tpu.pipeline_mode<synchronous>, transform_indices = @transform_2, window_bounds = array<i64: 1, 128>}, {pipeline_mode = #tpu.pipeline_mode<synchronous>, transform_indices = @transform_3, window_bounds = array<i64: 128, 128>}, {pipeline_mode = #tpu.pipeline_mode<synchronous>, transform_indices = @transform_4, window_bounds = array<i64: 1, 128>}, {pipeline_mode = #tpu.pipeline_mode<synchronous>, transform_indices = @transform_5, window_bounds = array<i64: 128, 128>}, {pipeline_mode = #tpu.pipeline_mode<synchronous>, transform_indices = @transform_6, window_bounds = array<i64: 1, 128>}, {transform_indices = @transform_7, window_bounds = array<i64: 2, 128>}]} {
    %c0 = arith.constant 0 : index
    %c0_0 = arith.constant 0 : index
    %0 = vector.load %arg1[%c0, %c0_0] : memref<2x796xbf16, #tpu.memory_space<vmem>>, vector<2x796xbf16>
    %c0_1 = arith.constant 0 : index
    %c0_2 = arith.constant 0 : index
    %1 = vector.load %arg2[%c0_1, %c0_2] : memref<796x128xbf16, #tpu.memory_space<vmem>>, vector<796x128xbf16>
    %cst = arith.constant dense<0.000000e+00> : vector<2x128xf32>
    %2 = tpu.matmul %0, %1, %cst {dimension_numbers = #tpu.dot_dimension_numbers<[1], [0], [0], [1], [0, 0, 1, 1], [], []>} : vector<2x796xbf16>, vector<796x128xbf16>, vector<2x128xf32> -> vector<2x128xf32>
    %c0_3 = arith.constant 0 : index
    %c0_4 = arith.constant 0 : index
    %3 = vector.load %arg3[%c0_3, %c0_4] : memref<1x128xf32, #tpu.memory_space<vmem>>, vector<1x128xf32>
    %4 = vector.broadcast %3 : vector<1x128xf32> to vector<2x128xf32>
    %5 = arith.addf %2, %4 : vector<2x128xf32>
    %cst_5 = arith.constant 0.000000e+00 : f32
    %6 = vector.broadcast %cst_5 : f32 to vector<2x128xf32>
    %7 = arith.maximumf %5, %6 : vector<2x128xf32>
    %8 = arith.truncf %7 : vector<2x128xf32> to vector<2x128xbf16>
    %c0_6 = arith.constant 0 : index
    %c0_7 = arith.constant 0 : index
    %9 = vector.load %arg4[%c0_6, %c0_7] : memref<128x128xbf16, #tpu.memory_space<vmem>>, vector<128x128xbf16>
    %cst_8 = arith.constant dense<0.000000e+00> : vector<2x128xf32>
    %10 = tpu.matmul %8, %9, %cst_8 {dimension_numbers = #tpu.dot_dimension_numbers<[1], [0], [0], [1], [0, 0, 1, 1], [], []>} : vector<2x128xbf16>, vector<128x128xbf16>, vector<2x128xf32> -> vector<2x128xf32>
    %c0_9 = arith.constant 0 : index
    %c0_10 = arith.constant 0 : index
    %11 = vector.load %arg5[%c0_9, %c0_10] : memref<1x128xf32, #tpu.memory_space<vmem>>, vector<1x128xf32>
    %12 = vector.broadcast %11 : vector<1x128xf32> to vector<2x128xf32>
    %13 = arith.addf %10, %12 : vector<2x128xf32>
    %cst_11 = arith.constant 0.000000e+00 : f32
    %14 = vector.broadcast %cst_11 : f32 to vector<2x128xf32>
    %15 = arith.maximumf %13, %14 : vector<2x128xf32>
    %16 = arith.truncf %15 : vector<2x128xf32> to vector<2x128xbf16>
    %c0_12 = arith.constant 0 : index
    %c0_13 = arith.constant 0 : index
    %17 = vector.load %arg6[%c0_12, %c0_13] : memref<128x128xbf16, #tpu.memory_space<vmem>>, vector<128x128xbf16>
    %cst_14 = arith.constant dense<0.000000e+00> : vector<2x128xf32>
    %18 = tpu.matmul %16, %17, %cst_14 {dimension_numbers = #tpu.dot_dimension_numbers<[1], [0], [0], [1], [0, 0, 1, 1], [], []>} : vector<2x128xbf16>, vector<128x128xbf16>, vector<2x128xf32> -> vector<2x128xf32>
    %c0_15 = arith.constant 0 : index
    %c0_16 = arith.constant 0 : index
    %19 = vector.load %arg7[%c0_15, %c0_16] : memref<1x128xf32, #tpu.memory_space<vmem>>, vector<1x128xf32>
    %20 = vector.broadcast %19 : vector<1x128xf32> to vector<2x128xf32>
    %21 = arith.addf %18, %20 : vector<2x128xf32>
    %c0_17 = arith.constant 0 : index
    %c0_18 = arith.constant 0 : index
    %22 = vector.load %arg8[%c0_17, %c0_18] : memref<2x128xf32, #tpu.memory_space<vmem>>, vector<2x128xf32>
    tpu.vector_store %arg8[%c0_17, %c0_18], %21 {strides = array<i32>} : memref<2x128xf32, #tpu.memory_space<vmem>>, vector<2x128xf32>,
    return
  }
  func.func @transform_0(%arg0: i32) -> (i32, i32) {
    %c0_i32 = arith.constant 0 : i32
    %c0_i32_0 = arith.constant 0 : i32
    return %arg0, %c0_i32 : i32, i32
  }
  func.func @transform_1(%arg0: i32) -> (i32, i32) {
    %c0_i32 = arith.constant 0 : i32
    %c0_i32_0 = arith.constant 0 : i32
    %c0_i32_1 = arith.constant 0 : i32
    return %c0_i32, %c0_i32_0 : i32, i32
  }
  func.func @transform_2(%arg0: i32) -> (i32, i32) {
    %c0_i32 = arith.constant 0 : i32
    %c0_i32_0 = arith.constant 0 : i32
    %c0_i32_1 = arith.constant 0 : i32
    return %c0_i32, %c0_i32_0 : i32, i32
  }
  func.func @transform_3(%arg0: i32) -> (i32, i32) {
    %c0_i32 = arith.constant 0 : i32
    %c0_i32_0 = arith.constant 0 : i32
    %c0_i32_1 = arith.constant 0 : i32
    return %c0_i32, %c0_i32_0 : i32, i32
  }
  func.func @transform_4(%arg0: i32) -> (i32, i32) {
    %c0_i32 = arith.constant 0 : i32
    %c0_i32_0 = arith.constant 0 : i32
    %c0_i32_1 = arith.constant 0 : i32
    return %c0_i32, %c0_i32_0 : i32, i32
  }
  func.func @transform_5(%arg0: i32) -> (i32, i32) {
    %c0_i32 = arith.constant 0 : i32
    %c0_i32_0 = arith.constant 0 : i32
    %c0_i32_1 = arith.constant 0 : i32
    return %c0_i32, %c0_i32_0 : i32, i32
  }
  func.func @transform_6(%arg0: i32) -> (i32, i32) {
    %c0_i32 = arith.constant 0 : i32
    %c0_i32_0 = arith.constant 0 : i32
    %c0_i32_1 = arith.constant 0 : i32
    return %c0_i32, %c0_i32_0 : i32, i32
  }
  func.func @transform_7(%arg0: i32) -> (i32, i32) {
    %c0_i32 = arith.constant 0 : i32
    %c0_i32_0 = arith.constant 0 : i32
    return %arg0, %c0_i32 : i32, i32
  }
}

</mosaic_0001>

<llo_original>
// kernel: tpu_custom_call.1
$region0: #{tpu_custom_call.1}
  #allocation0 [shape = 'u32[]', space=smem, size = 0x4, offset = 0x4, fixed_abs, tag = 'smem constant byte address 0x4 - core index']
  #allocation1 [shape = 'u32[72,128]{1,0:T(1,128)}', space=vmem, size = 0x9000, scoped, tag = 'internal scratch']
  %s0 = inlined_call_operand.hbm [shape: bf16[2,796], index: 0, kind: input, shape index: {}]
  %s1 = inlined_call_operand.hbm [shape: bf16[796,128], index: 1, kind: input, shape index: {}]
  %s2 = inlined_call_operand.vmem [shape: f32[1,128], index: 2, kind: input, shape index: {}]
  %s3 = inlined_call_operand.hbm [shape: bf16[128,128], index: 3, kind: input, shape index: {}]
  %s4 = inlined_call_operand.vmem [shape: f32[1,128], index: 4, kind: input, shape index: {}]
  %s5 = inlined_call_operand.hbm [shape: bf16[128,128], index: 5, kind: input, shape index: {}]
  %s6 = inlined_call_operand.vmem [shape: f32[1,128], index: 6, kind: input, shape index: {}]
  %s7 = inlined_call_operand.hbm [shape: f32[2,128], index: 7, kind: output, shape index: {}]
  %s8 = sld [smem:[#allocation0]]
  $region54: #{tpu_custom_call.1} parent=0
    _
  %s10 = ssub.s32 1, %s8
  %s11 = scalar_select 0, %s10, %s8
  $region1: #{tpu_custom_call.1} parent=0
    #allocation2 [shape = 'u8[3584]{0}', space=vmem, size = 0x1000, scoped, tag = 'input window, operand 0, single buffered']
    #allocation3 [shape = 's32[1]{0}', space=sflag, size = 0x4, scoped, tag = 'scoped memory for tpu_custom_call.1']
    #allocation4 [shape = 's32[1]{0}', space=sflag, size = 0x4, scoped, tag = 'scoped memory for tpu_custom_call.1']
    #allocation5 [shape = 'u8[204800]{0}', space=vmem, size = 0x32000, scoped, tag = 'input window, operand 1, single buffered']
    #allocation6 [shape = 's32[1]{0}', space=sflag, size = 0x4, scoped, tag = 'scoped memory for tpu_custom_call.1']
    #allocation7 [shape = 'u8[32768]{0}', space=vmem, size = 0x8000, scoped, tag = 'input window, operand 3, single buffered']
    #allocation8 [shape = 'u8[32768]{0}', space=vmem, size = 0x8000, scoped, tag = 'input window, operand 5, single buffered']
    #allocation9 [shape = 's32[1]{0}', space=sflag, size = 0x4, scoped, tag = 'scoped memory for tpu_custom_call.1']
    #allocation10 [shape = 'u8[1024]{0}', space=vmem, size = 0x400, scoped, tag = 'output window, operand 0, single buffered']
    %12 = vsyncpa [#allocation3], 0
    %13 = vsyncpa [#allocation6], 0
    %14 = vsyncpa [#allocation9], 0
    %15 = vsyncpa [#allocation4], 0
    // Predicated region
    $region2: #{tpu_custom_call.1} parent=1 // pred_check
      _
    $region3: #{tpu_custom_call.1} parent=1 // pred_check_branch
      %17 = sbr.rel (0) target = $region5
    $region4: #{tpu_custom_call.1} parent=1 // pred_region
      %19 = vsyncadd [#allocation3], 0
      %s21 = sshll.u32 %s0, 4
      %s22 = int_to_ptr.hbm [resolvable:$true] %s21
      %s23 = sshll.u32 [#allocation2], 4
      %s24 = int_to_ptr.vmem [resolvable:$true] %s23
      %26 = dma.hbm_to_vmem [thread:$0]  %s22, 112, %s24, [#allocation3]
    $region5: #{tpu_custom_call.1} parent=1 // pred_fallthru
      _
    // Predicated region
    $region6: #{tpu_custom_call.1} parent=1 // pred_check
      _
    $region7: #{tpu_custom_call.1} parent=1 // pred_check_branch
      %28 = sbr.rel (0) target = $region9
    $region8: #{tpu_custom_call.1} parent=1 // pred_region
      %30 = vsyncadd [#allocation6], 0
      %s31 = sshll.u32 %s1, 4
      %s32 = int_to_ptr.hbm [resolvable:$true] %s31
      %s33 = sshll.u32 [#allocation5], 4
      %s34 = int_to_ptr.vmem [resolvable:$true] %s33
      %39 = dma.hbm_to_vmem [thread:$0]  %s32, 6400, %s34, [#allocation6], 64, 64, 4
    $region9: #{tpu_custom_call.1} parent=1 // pred_fallthru
      _
    // Predicated region
    $region10: #{tpu_custom_call.1} parent=1 // pred_check
      _
    $region11: #{tpu_custom_call.1} parent=1 // pred_check_branch
      %41 = sbr.rel (0) target = $region13
    $region12: #{tpu_custom_call.1} parent=1 // pred_region
      _
    $region13: #{tpu_custom_call.1} parent=1 // pred_fallthru
      _
    // Predicated region
    $region14: #{tpu_custom_call.1} parent=1 // pred_check
      _
    $region15: #{tpu_custom_call.1} parent=1 // pred_check_branch
      %43 = sbr.rel (0) target = $region17
    $region16: #{tpu_custom_call.1} parent=1 // pred_region
      %45 = vsyncadd [#allocation6], 0
      %s46 = sshll.u32 %s3, 4
      %s47 = int_to_ptr.hbm [resolvable:$true] %s46
      %s48 = sshll.u32 [#allocation7], 4
      %s49 = int_to_ptr.vmem [resolvable:$true] %s48
      %54 = dma.hbm_to_vmem [thread:$0]  %s47, 1024, %s49, [#allocation6], 64, 64, 4
    $region17: #{tpu_custom_call.1} parent=1 // pred_fallthru
      _
    // Predicated region
    $region18: #{tpu_custom_call.1} parent=1 // pred_check
      _
    $region19: #{tpu_custom_call.1} parent=1 // pred_check_branch
      %56 = sbr.rel (0) target = $region21
    $region20: #{tpu_custom_call.1} parent=1 // pred_region
      _
    $region21: #{tpu_custom_call.1} parent=1 // pred_fallthru
      _
    // Predicated region
    $region22: #{tpu_custom_call.1} parent=1 // pred_check
      _
    $region23: #{tpu_custom_call.1} parent=1 // pred_check_branch
      %58 = sbr.rel (0) target = $region25
    $region24: #{tpu_custom_call.1} parent=1 // pred_region
      %60 = vsyncadd [#allocation9], 0
      %s61 = sshll.u32 %s5, 4
      %s62 = int_to_ptr.hbm [resolvable:$true] %s61
      %s63 = sshll.u32 [#allocation8], 4
      %s64 = int_to_ptr.vmem [resolvable:$true] %s63
      %69 = dma.hbm_to_vmem [thread:$0]  %s62, 1024, %s64, [#allocation9], 64, 64, 4
    $region25: #{tpu_custom_call.1} parent=1 // pred_fallthru
      _
    // Predicated region
    $region26: #{tpu_custom_call.1} parent=1 // pred_check
      _
    $region27: #{tpu_custom_call.1} parent=1 // pred_check_branch
      %71 = sbr.rel (0) target = $region29
    $region28: #{tpu_custom_call.1} parent=1 // pred_region
      _
    $region29: #{tpu_custom_call.1} parent=1 // pred_fallthru
      _
    // Predicated region
    $region30: #{tpu_custom_call.1} parent=1 // pred_check
      _
    $region31: #{tpu_custom_call.1} parent=1 // pred_check_branch
      %73 = sbr.rel (0) target = $region33
    $region32: #{tpu_custom_call.1} parent=1 // pred_region
      %75 = dma.done [#allocation3], 112
    $region33: #{tpu_custom_call.1} parent=1 // pred_fallthru
      _
    // Predicated region
    $region34: #{tpu_custom_call.1} parent=1 // pred_check
      _
    $region35: #{tpu_custom_call.1} parent=1 // pred_check_branch
      %77 = sbr.rel (0) target = $region37
    $region36: #{tpu_custom_call.1} parent=1 // pred_region
      %79 = dma.done [#allocation6], 6400
    $region37: #{tpu_custom_call.1} parent=1 // pred_fallthru
      _
    // Predicated region
    $region38: #{tpu_custom_call.1} parent=1 // pred_check
      _
    $region39: #{tpu_custom_call.1} parent=1 // pred_check_branch
      %81 = sbr.rel (0) target = $region41
    $region40: #{tpu_custom_call.1} parent=1 // pred_region
      %83 = dma.done [#allocation6], 1024
    $region41: #{tpu_custom_call.1} parent=1 // pred_fallthru
      _
    // Predicated region
    $region42: #{tpu_custom_call.1} parent=1 // pred_check
      _
    $region43: #{tpu_custom_call.1} parent=1 // pred_check_branch
      %85 = sbr.rel (0) target = $region45
    $region44: #{tpu_custom_call.1} parent=1 // pred_region
      %87 = dma.done [#allocation9], 1024
    $region45: #{tpu_custom_call.1} parent=1 // pred_fallthru
      _
    %v89 = vld [vmem:[#allocation2] sm:$0x7f]
    %v90 = vld [vmem:[#allocation5] sm:$0xf]
    %v91 = vld [vmem:[#allocation5 + $0x4] sm:$0xf]
    %v92 = vld [vmem:[#allocation5 + $0x8] sm:$0xf]
    %v93 = vld [vmem:[#allocation5 + $0xc] sm:$0xf]
    %v94 = vld [vmem:[#allocation5 + $0x10] sm:$0xf]
    %v95 = vld [vmem:[#allocation5 + $0x14] sm:$0xf]
    %v96 = vld [vmem:[#allocation5 + $0x18] sm:$0xf]
    %v97 = vld [vmem:[#allocation5 + $0x1c] sm:$0xf]
    %v98 = vld [vmem:[#allocation5 + $0x20] sm:$0xf]
    %v99 = vld [vmem:[#allocation5 + $0x24] sm:$0xf]
    %v100 = vld [vmem:[#allocation5 + $0x28] sm:$0xf]
    %v101 = vld [vmem:[#allocation5 + $0x2c] sm:$0xf]
    %v102 = vld [vmem:[#allocation5 + $0x30] sm:$0xf]
    %v103 = vld [vmem:[#allocation5 + $0x34] sm:$0xf]
    %v104 = vld [vmem:[#allocation5 + $0x38] sm:$0xf]
    %v105 = vld [vmem:[#allocation5 + $0x3c] sm:$0xf]
    %v106 = vld [vmem:[#allocation5 + $0x40] sm:$0xf]
    %v107 = vld [vmem:[#allocation5 + $0x44] sm:$0xf]
    %v108 = vld [vmem:[#allocation5 + $0x48] sm:$0xf]
    %v109 = vld [vmem:[#allocation5 + $0x4c] sm:$0xf]
    %v110 = vld [vmem:[#allocation5 + $0x50] sm:$0xf]
    %v111 = vld [vmem:[#allocation5 + $0x54] sm:$0xf]
    %v112 = vld [vmem:[#allocation5 + $0x58] sm:$0xf]
    %v113 = vld [vmem:[#allocation5 + $0x5c] sm:$0xf]
    %v114 = vld [vmem:[#allocation5 + $0x60] sm:$0xf]
    %v115 = vld [vmem:[#allocation5 + $0x64] sm:$0xf]
    %v116 = vld [vmem:[#allocation5 + $0x68] sm:$0xf]
    %v117 = vld [vmem:[#allocation5 + $0x6c] sm:$0xf]
    %v118 = vld [vmem:[#allocation5 + $0x70] sm:$0xf]
    %v119 = vld [vmem:[#allocation5 + $0x74] sm:$0xf]
    %v120 = vld [vmem:[#allocation5 + $0x78] sm:$0xf]
    %v121 = vld [vmem:[#allocation5 + $0x7c] sm:$0xf]
    %v122 = vld [vmem:[#allocation5 + $0x80] sm:$0xf]
    %v123 = vld [vmem:[#allocation5 + $0x84] sm:$0xf]
    %v124 = vld [vmem:[#allocation5 + $0x88] sm:$0xf]
    %v125 = vld [vmem:[#allocation5 + $0x8c] sm:$0xf]
    %v126 = vld [vmem:[#allocation5 + $0x90] sm:$0xf]
    %v127 = vld [vmem:[#allocation5 + $0x94] sm:$0xf]
    %v128 = vld [vmem:[#allocation5 + $0x98] sm:$0xf]
    %v129 = vld [vmem:[#allocation5 + $0x9c] sm:$0xf]
    %v130 = vld [vmem:[#allocation5 + $0xa0] sm:$0xf]
    %v131 = vld [vmem:[#allocation5 + $0xa4] sm:$0xf]
    %v132 = vld [vmem:[#allocation5 + $0xa8] sm:$0xf]
    %v133 = vld [vmem:[#allocation5 + $0xac] sm:$0xf]
    %v134 = vld [vmem:[#allocation5 + $0xb0] sm:$0xf]
    %v135 = vld [vmem:[#allocation5 + $0xb4] sm:$0xf]
    %v136 = vld [vmem:[#allocation5 + $0xb8] sm:$0xf]
    %v137 = vld [vmem:[#allocation5 + $0xbc] sm:$0xf]
    %v138 = vld [vmem:[#allocation5 + $0xc0] sm:$0xf]
    %v139 = vld [vmem:[#allocation5 + $0xc4] sm:$0xf]
    %v140 = vld [vmem:[#allocation5 + $0xc8] sm:$0xf]
    %v141 = vld [vmem:[#allocation5 + $0xcc] sm:$0xf]
    %v142 = vld [vmem:[#allocation5 + $0xd0] sm:$0xf]
    %v143 = vld [vmem:[#allocation5 + $0xd4] sm:$0xf]
    %v144 = vld [vmem:[#allocation5 + $0xd8] sm:$0xf]
    %v145 = vld [vmem:[#allocation5 + $0xdc] sm:$0xf]
    %v146 = vld [vmem:[#allocation5 + $0xe0] sm:$0xf]
    %v147 = vld [vmem:[#allocation5 + $0xe4] sm:$0xf]
    %v148 = vld [vmem:[#allocation5 + $0xe8] sm:$0xf]
    %v149 = vld [vmem:[#allocation5 + $0xec] sm:$0xf]
    %v150 = vld [vmem:[#allocation5 + $0xf0] sm:$0xf]
    %v151 = vld [vmem:[#allocation5 + $0xf4] sm:$0xf]
    %v152 = vld [vmem:[#allocation5 + $0xf8] sm:$0xf]
    %v153 = vld [vmem:[#allocation5 + $0xfc] sm:$0xf]
    %v154 = vld [vmem:[#allocation5 + $0x100] sm:$0xf]
    %v155 = vld [vmem:[#allocation5 + $0x104] sm:$0xf]
    %v156 = vld [vmem:[#allocation5 + $0x108] sm:$0xf]
    %v157 = vld [vmem:[#allocation5 + $0x10c] sm:$0xf]
    %v158 = vld [vmem:[#allocation5 + $0x110] sm:$0xf]
    %v159 = vld [vmem:[#allocation5 + $0x114] sm:$0xf]
    %v160 = vld [vmem:[#allocation5 + $0x118] sm:$0xf]
    %v161 = vld [vmem:[#allocation5 + $0x11c] sm:$0xf]
    %v162 = vld [vmem:[#allocation5 + $0x120] sm:$0xf]
    %v163 = vld [vmem:[#allocation5 + $0x124] sm:$0xf]
    %v164 = vld [vmem:[#allocation5 + $0x128] sm:$0xf]
    %v165 = vld [vmem:[#allocation5 + $0x12c] sm:$0xf]
    %v166 = vld [vmem:[#allocation5 + $0x130] sm:$0xf]
    %v167 = vld [vmem:[#allocation5 + $0x134] sm:$0xf]
    %v168 = vld [vmem:[#allocation5 + $0x138] sm:$0xf]
    %v169 = vld [vmem:[#allocation5 + $0x13c] sm:$0xf]
    %v170 = vld [vmem:[#allocation5 + $0x140] sm:$0xf]
    %v171 = vld [vmem:[#allocation5 + $0x144] sm:$0xf]
    %v172 = vld [vmem:[#allocation5 + $0x148] sm:$0xf]
    %v173 = vld [vmem:[#allocation5 + $0x14c] sm:$0xf]
    %v174 = vld [vmem:[#allocation5 + $0x150] sm:$0xf]
    %v175 = vld [vmem:[#allocation5 + $0x154] sm:$0xf]
    %v176 = vld [vmem:[#allocation5 + $0x158] sm:$0xf]
    %v177 = vld [vmem:[#allocation5 + $0x15c] sm:$0xf]
    %v178 = vld [vmem:[#allocation5 + $0x160] sm:$0xf]
    %v179 = vld [vmem:[#allocation5 + $0x164] sm:$0xf]
    %v180 = vld [vmem:[#allocation5 + $0x168] sm:$0xf]
    %v181 = vld [vmem:[#allocation5 + $0x16c] sm:$0xf]
    %v182 = vld [vmem:[#allocation5 + $0x170] sm:$0xf]
    %v183 = vld [vmem:[#allocation5 + $0x174] sm:$0xf]
    %v184 = vld [vmem:[#allocation5 + $0x178] sm:$0xf]
    %v185 = vld [vmem:[#allocation5 + $0x17c] sm:$0xf]
    %v186 = vld [vmem:[#allocation5 + $0x180] sm:$0xf]
    %v187 = vld [vmem:[#allocation5 + $0x184] sm:$0xf]
    %v188 = vld [vmem:[#allocation5 + $0x188] sm:$0xf]
    %v189 = vld [vmem:[#allocation5 + $0x18c] sm:$0x3]
    %v190 = vld [vmem:[%s2] sm:$0x1]
    %v192 = vperm.slane %v190, 0
    %195 = vst [vmem:[#allocation1] ss:$9 sm:$0xff] %v89
    %v196 = vld [vmem:[#allocation1] sm:$0xff]
    %v197 = vld [vmem:[#allocation1 + $0x9] sm:$0xff]
    %v198 = vld [vmem:[#allocation1 + $0x12] sm:$0xff]
    %v199 = vld [vmem:[#allocation1 + $0x1b] sm:$0xff]
    %v200 = vld [vmem:[#allocation1 + $0x24] sm:$0xff]
    %v201 = vld [vmem:[#allocation1 + $0x2d] sm:$0xff]
    %v202 = vld [vmem:[#allocation1 + $0x36] sm:$0xff]
    %v309 = vunpack.c.l.b16 %v90
    %v310 = vunpack.c.l.b16 %v91
    %v311 = vunpack.c.l.b16 %v92
    %v312 = vunpack.c.l.b16 %v93
    %v313 = vunpack.c.l.b16 %v94
    %v314 = vunpack.c.l.b16 %v95
    %v315 = vunpack.c.l.b16 %v96
    %v316 = vunpack.c.l.b16 %v97
    %v317 = vunpack.c.l.b16 %v98
    %v318 = vunpack.c.l.b16 %v99
    %v319 = vunpack.c.l.b16 %v100
    %v320 = vunpack.c.l.b16 %v101
    %v321 = vunpack.c.l.b16 %v102
    %v322 = vunpack.c.l.b16 %v103
    %v323 = vunpack.c.l.b16 %v104
    %v324 = vunpack.c.l.b16 %v105
    %v325 = vunpack.c.l.b16 %v106
    %v326 = vunpack.c.l.b16 %v107
    %v327 = vunpack.c.l.b16 %v108
    %v328 = vunpack.c.l.b16 %v109
    %v329 = vunpack.c.l.b16 %v110
    %v330 = vunpack.c.l.b16 %v111
    %v331 = vunpack.c.l.b16 %v112
    %v332 = vunpack.c.l.b16 %v113
    %v333 = vunpack.c.l.b16 %v114
    %v334 = vunpack.c.l.b16 %v115
    %v335 = vunpack.c.l.b16 %v116
    %v336 = vunpack.c.l.b16 %v117
    %v337 = vunpack.c.l.b16 %v118
    %v338 = vunpack.c.l.b16 %v119
    %v339 = vunpack.c.l.b16 %v120
    %v340 = vunpack.c.l.b16 %v121
    %v341 = vunpack.c.l.b16 %v122
    %v342 = vunpack.c.l.b16 %v123
    %v343 = vunpack.c.l.b16 %v124
    %v344 = vunpack.c.l.b16 %v125
    %v345 = vunpack.c.l.b16 %v126
    %v346 = vunpack.c.l.b16 %v127
    %v347 = vunpack.c.l.b16 %v128
    %v348 = vunpack.c.l.b16 %v129
    %v349 = vunpack.c.l.b16 %v130
    %v350 = vunpack.c.l.b16 %v131
    %v351 = vunpack.c.l.b16 %v132
    %v352 = vunpack.c.l.b16 %v133
    %v353 = vunpack.c.l.b16 %v134
    %v354 = vunpack.c.l.b16 %v135
    %v355 = vunpack.c.l.b16 %v136
    %v356 = vunpack.c.l.b16 %v137
    %v357 = vunpack.c.l.b16 %v138
    %v358 = vunpack.c.l.b16 %v139
    %v359 = vunpack.c.l.b16 %v140
    %v360 = vunpack.c.l.b16 %v141
    %v361 = vunpack.c.l.b16 %v142
    %v362 = vunpack.c.l.b16 %v143
    %v363 = vunpack.c.l.b16 %v144
    %v364 = vunpack.c.l.b16 %v145
    %v365 = vunpack.c.l.b16 %v146
    %v366 = vunpack.c.l.b16 %v147
    %v367 = vunpack.c.l.b16 %v148
    %v368 = vunpack.c.l.b16 %v149
    %v369 = vunpack.c.l.b16 %v150
    %v370 = vunpack.c.l.b16 %v151
    %v371 = vunpack.c.l.b16 %v152
    %v372 = vunpack.c.l.b16 %v153
    %v373 = vunpack.c.l.b16 %v154
    %v374 = vunpack.c.l.b16 %v155
    %v375 = vunpack.c.l.b16 %v156
    %v376 = vunpack.c.l.b16 %v157
    %v377 = vunpack.c.l.b16 %v158
    %v378 = vunpack.c.l.b16 %v159
    %v379 = vunpack.c.l.b16 %v160
    %v380 = vunpack.c.l.b16 %v161
    %v381 = vunpack.c.l.b16 %v162
    %v382 = vunpack.c.l.b16 %v163
    %v383 = vunpack.c.l.b16 %v164
    %v384 = vunpack.c.l.b16 %v165
    %v385 = vunpack.c.l.b16 %v166
    %v386 = vunpack.c.l.b16 %v167
    %v387 = vunpack.c.l.b16 %v168
    %v388 = vunpack.c.l.b16 %v169
    %v389 = vunpack.c.l.b16 %v170
    %v390 = vunpack.c.l.b16 %v171
    %v391 = vunpack.c.l.b16 %v172
    %v392 = vunpack.c.l.b16 %v173
    %v393 = vunpack.c.l.b16 %v174
    %v394 = vunpack.c.l.b16 %v175
    %v395 = vunpack.c.l.b16 %v176
    %v396 = vunpack.c.l.b16 %v177
    %v397 = vunpack.c.l.b16 %v178
    %v398 = vunpack.c.l.b16 %v179
    %v399 = vunpack.c.l.b16 %v180
    %v400 = vunpack.c.l.b16 %v181
    %v401 = vunpack.c.l.b16 %v182
    %v402 = vunpack.c.l.b16 %v183
    %v403 = vunpack.c.l.b16 %v184
    %v404 = vunpack.c.l.b16 %v185
    %v405 = vunpack.c.l.b16 %v186
    %v406 = vunpack.c.l.b16 %v187
    %v407 = vunpack.c.l.b16 %v188
    %v408 = vunpack.c.l.b16 %v189
    %v409 = vpack.c.b16 %v310, %v309
    %v410 = vpack.c.b16 %v312, %v311
    %v411 = vpack.c.b16 %v314, %v313
    %v412 = vpack.c.b16 %v316, %v315
    %v413 = vpack.c.b16 %v318, %v317
    %v414 = vpack.c.b16 %v320, %v319
    %v415 = vpack.c.b16 %v322, %v321
    %v416 = vpack.c.b16 %v324, %v323
    %v417 = vpack.c.b16 %v326, %v325
    %v418 = vpack.c.b16 %v328, %v327
    %v419 = vpack.c.b16 %v330, %v329
    %v420 = vpack.c.b16 %v332, %v331
    %v421 = vpack.c.b16 %v334, %v333
    %v422 = vpack.c.b16 %v336, %v335
    %v423 = vpack.c.b16 %v338, %v337
    %v424 = vpack.c.b16 %v340, %v339
    %v425 = vpack.c.b16 %v342, %v341
    %v426 = vpack.c.b16 %v344, %v343
    %v427 = vpack.c.b16 %v346, %v345
    %v428 = vpack.c.b16 %v348, %v347
    %v429 = vpack.c.b16 %v350, %v349
    %v430 = vpack.c.b16 %v352, %v351
    %v431 = vpack.c.b16 %v354, %v353
    %v432 = vpack.c.b16 %v356, %v355
    %v433 = vpack.c.b16 %v358, %v357
    %v434 = vpack.c.b16 %v360, %v359
    %v435 = vpack.c.b16 %v362, %v361
    %v436 = vpack.c.b16 %v364, %v363
    %v437 = vpack.c.b16 %v366, %v365
    %v438 = vpack.c.b16 %v368, %v367
    %v439 = vpack.c.b16 %v370, %v369
    %v440 = vpack.c.b16 %v372, %v371
    %v441 = vpack.c.b16 %v374, %v373
    %v442 = vpack.c.b16 %v376, %v375
    %v443 = vpack.c.b16 %v378, %v377
    %v444 = vpack.c.b16 %v380, %v379
    %v445 = vpack.c.b16 %v382, %v381
    %v446 = vpack.c.b16 %v384, %v383
    %v447 = vpack.c.b16 %v386, %v385
    %v448 = vpack.c.b16 %v388, %v387
    %v449 = vpack.c.b16 %v390, %v389
    %v450 = vpack.c.b16 %v392, %v391
    %v451 = vpack.c.b16 %v394, %v393
    %v452 = vpack.c.b16 %v396, %v395
    %v453 = vpack.c.b16 %v398, %v397
    %v454 = vpack.c.b16 %v400, %v399
    %v455 = vpack.c.b16 %v402, %v401
    %v456 = vpack.c.b16 %v404, %v403
    %v457 = vpack.c.b16 %v406, %v405
    %v458 = vpack.c.b16 %v408, %v407
    %vm508 = vcmask 228352
    %v509 = vsel %vm508, %v202, 0
    %vm511 = vcmask 1045504
    %v513 = vsel %vm511, %v458, 0
    %515 = vmatpush.bf16.msra.mxu0 %v416
    %516 = vmatpush.bf16.msra.mxu0 %v415
    %517 = vmatpush.bf16.msra.mxu0 %v414
    %518 = vmatpush.bf16.msra.mxu0 %v413
    %519 = vmatpush.bf16.msra.mxu0 %v412
    %520 = vmatpush.bf16.msra.mxu0 %v411
    %521 = vmatpush.bf16.msra.mxu0 %v410
    %522 = vmatpush.bf16.msra.mxu0 %v409
    %523 = vmatmul.bf16.gmra.mxu0 %v196
    %v524 = vpop.f32.mrf.mxu0
    %v525 = vadd.f32 %v192, %v524
    %v526 = vpop.f32.mrf.mxu0
    %527 = vdwg.mxu0
    %528 = vmatpush.bf16.msra.mxu0 %v424
    %529 = vmatpush.bf16.msra.mxu0 %v423
    %530 = vmatpush.bf16.msra.mxu0 %v422
    %531 = vmatpush.bf16.msra.mxu0 %v421
    %532 = vmatpush.bf16.msra.mxu0 %v420
    %533 = vmatpush.bf16.msra.mxu0 %v419
    %534 = vmatpush.bf16.msra.mxu0 %v418
    %535 = vmatpush.bf16.msra.mxu0 %v417
    %536 = vmatmul.bf16.gmra.mxu0 %v197
    %v537 = vpop.f32.mrf.mxu0
    %v538 = vadd.f32 %v525, %v537
    %v539 = vpop.f32.mrf.mxu0
    %540 = vdwg.mxu0
    %541 = vmatpush.bf16.msra.mxu0 %v432
    %542 = vmatpush.bf16.msra.mxu0 %v431
    %543 = vmatpush.bf16.msra.mxu0 %v430
    %544 = vmatpush.bf16.msra.mxu0 %v429
    %545 = vmatpush.bf16.msra.mxu0 %v428
    %546 = vmatpush.bf16.msra.mxu0 %v427
    %547 = vmatpush.bf16.msra.mxu0 %v426
    %548 = vmatpush.bf16.msra.mxu0 %v425
    %549 = vmatmul.bf16.gmra.mxu0 %v198
    %v550 = vpop.f32.mrf.mxu0
    %v551 = vadd.f32 %v538, %v550
    %v552 = vpop.f32.mrf.mxu0
    %553 = vdwg.mxu0
    %554 = vmatpush.bf16.msra.mxu0 %v440
    %555 = vmatpush.bf16.msra.mxu0 %v439
    %556 = vmatpush.bf16.msra.mxu0 %v438
    %557 = vmatpush.bf16.msra.mxu0 %v437
    %558 = vmatpush.bf16.msra.mxu0 %v436
    %559 = vmatpush.bf16.msra.mxu0 %v435
    %560 = vmatpush.bf16.msra.mxu0 %v434
    %561 = vmatpush.bf16.msra.mxu0 %v433
    %562 = vmatmul.bf16.gmra.mxu0 %v199
    %v563 = vpop.f32.mrf.mxu0
    %v564 = vadd.f32 %v551, %v563
    %v565 = vpop.f32.mrf.mxu0
    %566 = vdwg.mxu0
    %567 = vmatpush.bf16.msra.mxu0 %v448
    %568 = vmatpush.bf16.msra.mxu0 %v447
    %569 = vmatpush.bf16.msra.mxu0 %v446
    %570 = vmatpush.bf16.msra.mxu0 %v445
    %571 = vmatpush.bf16.msra.mxu0 %v444
    %572 = vmatpush.bf16.msra.mxu0 %v443
    %573 = vmatpush.bf16.msra.mxu0 %v442
    %574 = vmatpush.bf16.msra.mxu0 %v441
    %575 = vmatmul.bf16.gmra.mxu0 %v200
    %v576 = vpop.f32.mrf.mxu0
    %v577 = vadd.f32 %v564, %v576
    %v578 = vpop.f32.mrf.mxu0
    %579 = vdwg.mxu0
    %580 = vmatpush.bf16.msra.mxu0 %v456
    %581 = vmatpush.bf16.msra.mxu0 %v455
    %582 = vmatpush.bf16.msra.mxu0 %v454
    %583 = vmatpush.bf16.msra.mxu0 %v453
    %584 = vmatpush.bf16.msra.mxu0 %v452
    %585 = vmatpush.bf16.msra.mxu0 %v451
    %586 = vmatpush.bf16.msra.mxu0 %v450
    %587 = vmatpush.bf16.msra.mxu0 %v449
    %588 = vmatmul.bf16.gmra.mxu0 %v201
    %v589 = vpop.f32.mrf.mxu0
    %v590 = vadd.f32 %v577, %v589
    %v591 = vpop.f32.mrf.mxu0
    %592 = vdwg.mxu0
    %593 = vmatpush.bf16.msra.mxu0 0
    %594 = vmatpush.bf16.msra.mxu0 0
    %595 = vmatpush.bf16.msra.mxu0 0
    %596 = vmatpush.bf16.msra.mxu0 0
    %597 = vmatpush.bf16.msra.mxu0 0
    %598 = vmatpush.bf16.msra.mxu0 0
    %599 = vmatpush.bf16.msra.mxu0 %v513
    %600 = vmatpush.bf16.msra.mxu0 %v457
    %601 = vmatmul.bf16.gmra.mxu0 %v509
    %v602 = vpop.f32.mrf.mxu0
    %v603 = vadd.f32 %v590, %v602
    %v604 = vpop.f32.mrf.mxu0
    %605 = vdwg.mxu0
    %v606 = vmax.f32 %v603, 0.0
    %v607 = vpack.c.bf16 %v606, %v606
    %v608 = vld [vmem:[#allocation7] sm:$0xf]
    %v609 = vld [vmem:[#allocation7 + $0x4] sm:$0xf]
    %v610 = vld [vmem:[#allocation7 + $0x8] sm:$0xf]
    %v611 = vld [vmem:[#allocation7 + $0xc] sm:$0xf]
    %v612 = vld [vmem:[#allocation7 + $0x10] sm:$0xf]
    %v613 = vld [vmem:[#allocation7 + $0x14] sm:$0xf]
    %v614 = vld [vmem:[#allocation7 + $0x18] sm:$0xf]
    %v615 = vld [vmem:[#allocation7 + $0x1c] sm:$0xf]
    %v616 = vld [vmem:[#allocation7 + $0x20] sm:$0xf]
    %v617 = vld [vmem:[#allocation7 + $0x24] sm:$0xf]
    %v618 = vld [vmem:[#allocation7 + $0x28] sm:$0xf]
    %v619 = vld [vmem:[#allocation7 + $0x2c] sm:$0xf]
    %v620 = vld [vmem:[#allocation7 + $0x30] sm:$0xf]
    %v621 = vld [vmem:[#allocation7 + $0x34] sm:$0xf]
    %v622 = vld [vmem:[#allocation7 + $0x38] sm:$0xf]
    %v623 = vld [vmem:[#allocation7 + $0x3c] sm:$0xf]
    %v624 = vld [vmem:[%s4] sm:$0x1]
    %v626 = vperm.slane %v624, 0
    %v644 = vunpack.c.l.b16 %v608
    %v645 = vunpack.c.l.b16 %v609
    %v646 = vunpack.c.l.b16 %v610
    %v647 = vunpack.c.l.b16 %v611
    %v648 = vunpack.c.l.b16 %v612
    %v649 = vunpack.c.l.b16 %v613
    %v650 = vunpack.c.l.b16 %v614
    %v651 = vunpack.c.l.b16 %v615
    %v652 = vunpack.c.l.b16 %v616
    %v653 = vunpack.c.l.b16 %v617
    %v654 = vunpack.c.l.b16 %v618
    %v655 = vunpack.c.l.b16 %v619
    %v656 = vunpack.c.l.b16 %v620
    %v657 = vunpack.c.l.b16 %v621
    %v658 = vunpack.c.l.b16 %v622
    %v659 = vunpack.c.l.b16 %v623
    %v660 = vpack.c.b16 %v645, %v644
    %v661 = vpack.c.b16 %v647, %v646
    %v662 = vpack.c.b16 %v649, %v648
    %v663 = vpack.c.b16 %v651, %v650
    %v664 = vpack.c.b16 %v653, %v652
    %v665 = vpack.c.b16 %v655, %v654
    %v666 = vpack.c.b16 %v657, %v656
    %v667 = vpack.c.b16 %v659, %v658
    %676 = vmatpush.bf16.msra.mxu0 %v667
    %677 = vmatpush.bf16.msra.mxu0 %v666
    %678 = vmatpush.bf16.msra.mxu0 %v665
    %679 = vmatpush.bf16.msra.mxu0 %v664
    %680 = vmatpush.bf16.msra.mxu0 %v663
    %681 = vmatpush.bf16.msra.mxu0 %v662
    %682 = vmatpush.bf16.msra.mxu0 %v661
    %683 = vmatpush.bf16.msra.mxu0 %v660
    %684 = vmatmul.bf16.gmra.mxu0 %v607
    %v685 = vpop.f32.mrf.mxu0
    %v686 = vadd.f32 %v626, %v685
    %v687 = vpop.f32.mrf.mxu0
    %688 = vdwg.mxu0
    %v689 = vmax.f32 %v686, 0.0
    %v690 = vpack.c.bf16 %v689, %v689
    %v691 = vld [vmem:[#allocation8] sm:$0xf]
    %v692 = vld [vmem:[#allocation8 + $0x4] sm:$0xf]
    %v693 = vld [vmem:[#allocation8 + $0x8] sm:$0xf]
    %v694 = vld [vmem:[#allocation8 + $0xc] sm:$0xf]
    %v695 = vld [vmem:[#allocation8 + $0x10] sm:$0xf]
    %v696 = vld [vmem:[#allocation8 + $0x14] sm:$0xf]
    %v697 = vld [vmem:[#allocation8 + $0x18] sm:$0xf]
    %v698 = vld [vmem:[#allocation8 + $0x1c] sm:$0xf]
    %v699 = vld [vmem:[#allocation8 + $0x20] sm:$0xf]
    %v700 = vld [vmem:[#allocation8 + $0x24] sm:$0xf]
    %v701 = vld [vmem:[#allocation8 + $0x28] sm:$0xf]
    %v702 = vld [vmem:[#allocation8 + $0x2c] sm:$0xf]
    %v703 = vld [vmem:[#allocation8 + $0x30] sm:$0xf]
    %v704 = vld [vmem:[#allocation8 + $0x34] sm:$0xf]
    %v705 = vld [vmem:[#allocation8 + $0x38] sm:$0xf]
    %v706 = vld [vmem:[#allocation8 + $0x3c] sm:$0xf]
    %v707 = vld [vmem:[%s6] sm:$0x1]
    %v709 = vperm.slane %v707, 0
    %v727 = vunpack.c.l.b16 %v691
    %v728 = vunpack.c.l.b16 %v692
    %v729 = vunpack.c.l.b16 %v693
    %v730 = vunpack.c.l.b16 %v694
    %v731 = vunpack.c.l.b16 %v695
    %v732 = vunpack.c.l.b16 %v696
    %v733 = vunpack.c.l.b16 %v697
    %v734 = vunpack.c.l.b16 %v698
    %v735 = vunpack.c.l.b16 %v699
    %v736 = vunpack.c.l.b16 %v700
    %v737 = vunpack.c.l.b16 %v701
    %v738 = vunpack.c.l.b16 %v702
    %v739 = vunpack.c.l.b16 %v703
    %v740 = vunpack.c.l.b16 %v704
    %v741 = vunpack.c.l.b16 %v705
    %v742 = vunpack.c.l.b16 %v706
    %v743 = vpack.c.b16 %v728, %v727
    %v744 = vpack.c.b16 %v730, %v729
    %v745 = vpack.c.b16 %v732, %v731
    %v746 = vpack.c.b16 %v734, %v733
    %v747 = vpack.c.b16 %v736, %v735
    %v748 = vpack.c.b16 %v738, %v737
    %v749 = vpack.c.b16 %v740, %v739
    %v750 = vpack.c.b16 %v742, %v741
    %759 = vmatpush.bf16.msra.mxu0 %v750
    %760 = vmatpush.bf16.msra.mxu0 %v749
    %761 = vmatpush.bf16.msra.mxu0 %v748
    %762 = vmatpush.bf16.msra.mxu0 %v747
    %763 = vmatpush.bf16.msra.mxu0 %v746
    %764 = vmatpush.bf16.msra.mxu0 %v745
    %765 = vmatpush.bf16.msra.mxu0 %v744
    %766 = vmatpush.bf16.msra.mxu0 %v743
    %767 = vmatmul.bf16.gmra.mxu0 %v690
    %v768 = vpop.f32.mrf.mxu0
    %v769 = vadd.f32 %v709, %v768
    %v770 = vpop.f32.mrf.mxu0
    %771 = vdwg.mxu0
    %772 = vst [vmem:[#allocation10] sm:$0x3] %v769
    // Predicated region
    $region46: #{tpu_custom_call.1} parent=1 // pred_check
      _
    $region47: #{tpu_custom_call.1} parent=1 // pred_check_branch
      %774 = sbr.rel (0) target = $region49
    $region48: #{tpu_custom_call.1} parent=1 // pred_region
      %776 = vsyncadd [#allocation4], 0
      %s778 = sshll.u32 [#allocation10], 4
      %s779 = int_to_ptr.vmem [resolvable:$true] %s778
      %s780 = sshll.u32 %s7, 4
      %s781 = int_to_ptr.hbm [resolvable:$true] %s780
      %783 = dma.vmem_to_hbm [thread:$0]  %s779, 32, %s781, [#allocation4]
    $region49: #{tpu_custom_call.1} parent=1 // pred_fallthru
      _
    // Predicated region
    $region50: #{tpu_custom_call.1} parent=1 // pred_check
      _
    $region51: #{tpu_custom_call.1} parent=1 // pred_check_branch
      %785 = sbr.rel (0) target = $region53
    $region52: #{tpu_custom_call.1} parent=1 // pred_region
      %787 = dma.done [#allocation4], 32
    $region53: #{tpu_custom_call.1} parent=1 // pred_fallthru
      _
    %788 = vsyncpa [#allocation3], 1
    %789 = vsyncpa [#allocation6], 1
    %790 = vsyncpa [#allocation9], 1
    %791 = vsyncpa [#allocation4], 1

</llo_original>
